<compile_context>
chip_gen: v7x
topology: tpu7x:2x2x1
jax: 0.10.0
libtpu: 0.0.40
codegen_flags: <defaults>
</compile_context>

<pallas_src>
import jax
import jax.numpy as jnp
from jax.experimental import pallas as pl
from jax.experimental.pallas import tpu as pltpu

LANE = 128
SUBLANE = 8


def _round_up(x: int, m: int) -> int:
    return ((x + m - 1) // m) * m


def _pad_lanes(n: int) -> int:
    """Round a feature dim up to a multiple of 128 (lane-dense output slab)."""
    return max(LANE, _round_up(n, LANE))


def _batch_tile(batch: int) -> int:
    """Row tile: multiple of 8 sublanes, >=2 grid steps whenever batch >= 16
    (so v7x's two TensorCores can split the 'parallel' axis), capped at 1024."""
    if batch <= SUBLANE:
        return batch                       # single block (must equal full dim)
    half = _round_up(pl.cdiv(batch, 2), SUBLANE)
    return min(1024, half)


def _vmem_limit_bytes(act_bytes_per_step: int, weight_bytes: int) -> int:
    """Scoped-VMEM limit: double-buffered activations + resident weights + headroom."""
    need = 2 * act_bytes_per_step + 2 * weight_bytes + (4 << 20)
    return int(min(64 << 20, max(16 << 20, need)))


# ----------------------------------------------------------------------------
# Pallas kernels
# ----------------------------------------------------------------------------
def _gen_pred_kernel(u_ref, du_ref,
                     g_w1u_ref, g_w1d_ref, g_b1_ref, g_w2_ref, g_b2_ref,
                     p_w1_ref, p_b1_ref, p_w2_ref, p_b2_ref,
                     y_ref, d_ref):
    """Fused generator + predictor (GEN_AND_PRED). bf16 MXU operands, f32 math."""
    bf16 = jnp.bfloat16
    h1 = jnp.tanh(
        jnp.dot(u_ref[...].astype(bf16), g_w1u_ref[...],
                preferred_element_type=jnp.float32)
        + jnp.dot(du_ref[...].astype(bf16), g_w1d_ref[...],
                  preferred_element_type=jnp.float32)
        + g_b1_ref[...]
    )
    y = jnp.dot(h1.astype(bf16), g_w2_ref[...],
                preferred_element_type=jnp.float32) + g_b2_ref[...]
    y_ref[...] = y.astype(y_ref.dtype)                 # lane-dense 128-wide store
    # mirrors y.detach() in the spec; pallas_call has no VJP here so this is
    # documentary (see TODO on learn()).
    y_sg = jax.lax.stop_gradient(y)
    h2 = jnp.tanh(
        jnp.dot(y_sg.astype(bf16), p_w1_ref[...],
                preferred_element_type=jnp.float32) + p_b1_ref[...]
    )
    d_ref[...] = (
        jnp.dot(h2.astype(bf16), p_w2_ref[...],
                preferred_element_type=jnp.float32) + p_b2_ref[...]
    ).astype(d_ref.dtype)
    # TODO(synk): if forward() is always followed by compare(d, target, 'mse'),
    # the MSE reduction could be fused here with an optional target input.


def _gen_kernel(u_ref, du_ref, w1u_ref, w1d_ref, b1_ref, w2_ref, b2_ref, y_ref):
    """Generator only: y = tanh(u@W1u + du@W1du + b1) @ W2 + b2."""
    bf16 = jnp.bfloat16
    h1 = jnp.tanh(
        jnp.dot(u_ref[...].astype(bf16), w1u_ref[...],
                preferred_element_type=jnp.float32)
        + jnp.dot(du_ref[...].astype(bf16), w1d_ref[...],
                  preferred_element_type=jnp.float32)
        + b1_ref[...]
    )
    y_ref[...] = (
        jnp.dot(h1.astype(bf16), w2_ref[...],
                preferred_element_type=jnp.float32) + b2_ref[...]
    ).astype(y_ref.dtype)


def _pred_kernel(y_ref, w1_ref, b1_ref, w2_ref, b2_ref, d_ref):
    """Predictor only: d = tanh(y@W1 + b1) @ W2 + b2."""
    bf16 = jnp.bfloat16
    h = jnp.tanh(
        jnp.dot(y_ref[...].astype(bf16), w1_ref[...],
                preferred_element_type=jnp.float32) + b1_ref[...]
    )
    d_ref[...] = (
        jnp.dot(h.astype(bf16), w2_ref[...],
                preferred_element_type=jnp.float32) + b2_ref[...]
    ).astype(d_ref.dtype)


def _make_mse_kernel(rows: int, cols: int):
    """Tiled scalar MSE: persistent SMEM accumulator, init/finalize via pl.when."""
    def kernel(a_ref, b_ref, o_ref, acc_ref):
        i = pl.program_id(0)

        @pl.when(i == 0)
        def _():
            acc_ref[0] = jnp.float32(0.0)

        diff = a_ref[...].astype(jnp.float32) - b_ref[...].astype(jnp.float32)
        tb = a_ref.shape[0]
        if rows % tb:                      # mask the ragged last row-tile
            row = jax.lax.broadcasted_iota(jnp.int32, diff.shape, 0) + i * tb
            diff = jnp.where(row < rows, diff, 0.0)
        acc_ref[0] += jnp.sum(diff * diff)

        @pl.when(i == pl.num_programs(0) - 1)
        def _():
            o_ref[0, 0] = acc_ref[0] / jnp.float32(rows * cols)

    return kernel


# ----------------------------------------------------------------------------
# pallas_call wrappers
# ----------------------------------------------------------------------------
def _gen_and_pred_call(u, du, gen, pred):
    batch = u.shape[0]
    tb = _batch_tile(batch)
    grid = (pl.cdiv(batch, tb),)
    row = lambda i: (i, 0)   # activations / outputs tile over batch
    rep = lambda i: (0, 0)   # weights stay VMEM-resident across grid steps

    U, Udu, H = u.shape[1], du.shape[1], gen.hidden
    Yp, Dp = gen.y_pad, pred.d_pad
    weights = (gen.w1_u, gen.w1_du, gen.b1, gen.w2_pad, gen.b2_pad,
               pred.w1_pad, pred.b1, pred.w2_pad, pred.b2_pad)
    weight_bytes = sum(int(w.size) * w.dtype.itemsize for w in weights)
    act_bytes = tb * (U + Udu + Yp + Dp) * 4
    flops = 2 * batch * (U * H + Udu * H + H * Yp + Yp * H + H * Dp)
    trans = 2 * batch * H
    bytes_accessed = batch * (U + Udu + Yp + Dp) * 4 + weight_bytes

    y_pad, d_pad = pl.pallas_call(
        _gen_pred_kernel,
        out_shape=(
            jax.ShapeDtypeStruct((batch, Yp), jnp.float32),
            jax.ShapeDtypeStruct((batch, Dp), jnp.float32),
        ),
        grid=grid,
        in_specs=[
            pl.BlockSpec((tb, U), row),
            pl.BlockSpec((tb, Udu), row),
            pl.BlockSpec(gen.w1_u.shape, rep),
            pl.BlockSpec(gen.w1_du.shape, rep),
            pl.BlockSpec(gen.b1.shape, rep),
            pl.BlockSpec(gen.w2_pad.shape, rep),
            pl.BlockSpec(gen.b2_pad.shape, rep),
            pl.BlockSpec(pred.w1_pad.shape, rep),
            pl.BlockSpec(pred.b1.shape, rep),
            pl.BlockSpec(pred.w2_pad.shape, rep),
            pl.BlockSpec(pred.b2_pad.shape, rep),
        ],
        out_specs=(
            pl.BlockSpec((tb, Yp), row),
            pl.BlockSpec((tb, Dp), row),
        ),
        compiler_params=pltpu.CompilerParams(
            dimension_semantics=("parallel",),
            vmem_limit_bytes=_vmem_limit_bytes(act_bytes, weight_bytes)),
        cost_estimate=pl.CostEstimate(
            flops=int(flops), transcendentals=int(trans),
            bytes_accessed=int(bytes_accessed)),
    )(u, du, *weights)
    # Slice back to the module's contract shapes at the model boundary only.
    # TODO(synk): hot loops that can consume the padded 128-lane slab directly
    # should skip this slice (pad columns are exact zeros).
    return y_pad[:, :gen.y_dim], d_pad[:, :pred.d_dim]


def _generator_call(u, du, gen):
    batch = u.shape[0]
    tb = _batch_tile(batch)
    grid = (pl.cdiv(batch, tb),)
    row = lambda i: (i, 0)
    rep = lambda i: (0, 0)

    U, Udu, H, Yp = u.shape[1], du.shape[1], gen.hidden, gen.y_pad
    weights = (gen.w1_u, gen.w1_du, gen.b1, gen.w2_pad, gen.b2_pad)
    weight_bytes = sum(int(w.size) * w.dtype.itemsize for w in weights)
    act_bytes = tb * (U + Udu + Yp) * 4
    flops = 2 * batch * (U * H + Udu * H + H * Yp)

    y_pad = pl.pallas_call(
        _gen_kernel,
        out_shape=jax.ShapeDtypeStruct((batch, Yp), jnp.float32),
        grid=grid,
        in_specs=[
            pl.BlockSpec((tb, U), row),
            pl.BlockSpec((tb, Udu), row),
            pl.BlockSpec(gen.w1_u.shape, rep),
            pl.BlockSpec(gen.w1_du.shape, rep),
            pl.BlockSpec(gen.b1.shape, rep),
            pl.BlockSpec(gen.w2_pad.shape, rep),
            pl.BlockSpec(gen.b2_pad.shape, rep),
        ],
        out_specs=pl.BlockSpec((tb, Yp), row),
        compiler_params=pltpu.CompilerParams(
            dimension_semantics=("parallel",),
            vmem_limit_bytes=_vmem_limit_bytes(act_bytes, weight_bytes)),
        cost_estimate=pl.CostEstimate(
            flops=int(flops), transcendentals=int(batch * H),
            bytes_accessed=int(batch * (U + Udu + Yp) * 4 + weight_bytes)),
    )(u, du, *weights)
    return y_pad[:, :gen.y_dim]


def _predictor_call(y, pred):
    batch = y.shape[0]
    tb = _batch_tile(batch)
    grid = (pl.cdiv(batch, tb),)
    row = lambda i: (i, 0)
    rep = lambda i: (0, 0)

    Yin, H, Dp = y.shape[1], pred.hidden, pred.d_pad
    weights = (pred.w1, pred.b1, pred.w2_pad, pred.b2_pad)
    weight_bytes = sum(int(w.size) * w.dtype.itemsize for w in weights)
    act_bytes = tb * (Yin + Dp) * 4
    flops = 2 * batch * (Yin * H + H * Dp)

    d_pad = pl.pallas_call(
        _pred_kernel,
        out_shape=jax.ShapeDtypeStruct((batch, Dp), jnp.float32),
        grid=grid,
        in_specs=[
            pl.BlockSpec((tb, Yin), row),
            pl.BlockSpec(pred.w1.shape, rep),
            pl.BlockSpec(pred.b1.shape, rep),
            pl.BlockSpec(pred.w2_pad.shape, rep),
            pl.BlockSpec(pred.b2_pad.shape, rep),
        ],
        out_specs=pl.BlockSpec((tb, Dp), row),
        compiler_params=pltpu.CompilerParams(
            dimension_semantics=("parallel",),
            vmem_limit_bytes=_vmem_limit_bytes(act_bytes, weight_bytes)),
        cost_estimate=pl.CostEstimate(
            flops=int(flops), transcendentals=int(batch * H),
            bytes_accessed=int(batch * (Yin + Dp) * 4 + weight_bytes)),
    )(y, *weights)
    return d_pad[:, :pred.d_dim]


def _as_2d(x):
    x = jnp.asarray(x)
    if x.ndim == 2:
        return x
    if x.ndim <= 1:
        return x.reshape(1, -1)
    return x.reshape(-1, x.shape[-1])


def _mse_row_tile(rows: int, cols: int, itemsize: int) -> int:
    if rows <= SUBLANE:
        return rows
    target = max(SUBLANE, (4 << 20) // max(1, cols * itemsize))  # ~4 MiB / operand block
    tb = min(rows, target, 2048)
    return max(SUBLANE, (tb // SUBLANE) * SUBLANE)


def _mse(a, b):
    a = _as_2d(a)
    b = _as_2d(b)
    rows, cols = a.shape
    itemsize = max(jnp.dtype(a.dtype).itemsize, jnp.dtype(b.dtype).itemsize)
    tb = _mse_row_tile(rows, cols, itemsize)
    out = pl.pallas_call(
        _make_mse_kernel(rows, cols),
        out_shape=jax.ShapeDtypeStruct((1, 1), jnp.float32),
        grid=(pl.cdiv(rows, tb),),
        in_specs=[
            pl.BlockSpec((tb, cols), lambda i: (i, 0)),
            pl.BlockSpec((tb, cols), lambda i: (i, 0)),
        ],
        out_specs=pl.BlockSpec(memory_space=pltpu.SMEM),
        scratch_shapes=[pltpu.SMEM((1,), jnp.float32)],
        compiler_params=pltpu.CompilerParams(
            dimension_semantics=("arbitrary",)),   # reduction axis carries acc
    )(a, b)
    return out[0, 0]


# ----------------------------------------------------------------------------
# Synthetic generator / predictor (deterministic parameters)
# ----------------------------------------------------------------------------
class Generator:
    """y = MLP(concat(u, du)); W1 pre-split, weights pre-cast to bf16 (MXU-native)."""

    def __init__(self, key, u_dim, hidden, y_dim):
        k1, k2 = jax.random.split(key)
        scale1 = 1.0 / jnp.sqrt(2.0 * u_dim)
        scale2 = 1.0 / jnp.sqrt(float(hidden))
        w1 = jax.random.normal(k1, (2 * u_dim, hidden), jnp.float32) * scale1
        self.w1_u = w1[:u_dim].astype(jnp.bfloat16)    # concat(u,du)@W1 == u@W1u + du@W1du
        self.w1_du = w1[u_dim:].astype(jnp.bfloat16)
        self.b1 = jnp.zeros((1, hidden), jnp.float32)  # biases stay f32 (v5e-safe)
        w2 = jax.random.normal(k2, (hidden, y_dim), jnp.float32) * scale2
        self.u_dim = u_dim
        self.hidden = hidden
        self.y_dim = y_dim
        self.y_pad = _pad_lanes(y_dim)
        # lane-dense 128-wide output slab: zero-pad W2 cols / b2 once at init
        self.w2_pad = jnp.pad(w2, ((0, 0), (0, self.y_pad - y_dim))).astype(jnp.bfloat16)
        self.b2_pad = jnp.zeros((1, self.y_pad), jnp.float32)

    def forward(self, u, du, first=False):
        # TODO(synk): the reference generator may carry recurrent state keyed on
        # `first`; this synthetic generator is stateless.
        batch = (u if u is not None else du).shape[0]
        if u is None:
            u = jnp.zeros((batch, self.u_dim), jnp.float32)
        if du is None:
            du = jnp.zeros((batch, self.u_dim), jnp.float32)
        return _generator_call(u, du, self)


class Predictor:
    """d = MLP(y); weights pre-cast to bf16, lane-padded variants for the fused path."""

    def __init__(self, key, y_dim, hidden, d_dim):
        k1, k2 = jax.random.split(key)
        scale1 = 1.0 / jnp.sqrt(float(y_dim))
        scale2 = 1.0 / jnp.sqrt(float(hidden))
        w1 = jax.random.normal(k1, (y_dim, hidden), jnp.float32) * scale1
        self.w1 = w1.astype(jnp.bfloat16)              # used on unpadded y (PRED mode)
        self.y_dim = y_dim
        self.y_pad_in = _pad_lanes(y_dim)
        self.w1_pad = jnp.pad(w1, ((0, self.y_pad_in - y_dim), (0, 0))).astype(jnp.bfloat16)
        self.b1 = jnp.zeros((1, hidden), jnp.float32)
        self.hidden = hidden
        w2 = jax.random.normal(k2, (hidden, d_dim), jnp.float32) * scale2
        self.d_dim = d_dim
        self.d_pad = _pad_lanes(d_dim)
        self.w2_pad = jnp.pad(w2, ((0, 0), (0, self.d_pad - d_dim))).astype(jnp.bfloat16)
        self.b2_pad = jnp.zeros((1, self.d_pad), jnp.float32)

    def forward(self, y, first=False):
        return _predictor_call(y, self)


# ----------------------------------------------------------------------------
# Model wrapper (mirrors the PyTorch composition / mode logic)
# ----------------------------------------------------------------------------
class Model:
    GEN_AND_PRED = 0
    GEN = 1
    PRED = 2
    LEARN_GEN_AND_PRED = 3
    LEARN_GEN = 4
    LEARN_PRED = 5
    FORWARD_MODES = [GEN_AND_PRED, GEN, PRED]
    LEARN_MODES = [LEARN_GEN_AND_PRED, LEARN_GEN, LEARN_PRED]

    def __init__(self, generator, predictor, attributes, seed=-1):
        assert generator is not None or predictor is not None
        assert len(attributes) == 2, f"Expecting two sets of attributes, got {len(attributes)}"
        self.generator = generator
        self.predictor = predictor
        self.attributes = attributes
        self.seed = seed
        self.out = lambda x: None

    @staticmethod
    def detect_forward_mode(u, du, y, d):
        if y is None and d is None:
            return Model.GEN_AND_PRED
        elif y is None and d is not None:
            return Model.GEN
        elif du is None and u is None and y is not None and d is None:
            return Model.PRED
        raise ValueError("Unable to detect the forward mode")

    def forward(self, u, du, y, d, first=False):
        # NOTE: the PyTorch spec calls detect_forward_mode(du, u, ...); the
        # None-checks are symmetric in u/du, so passing (u, du, ...) is identical.
        mode = Model.detect_forward_mode(u, du, y, d)
        if mode == Model.GEN_AND_PRED:
            if self.generator is not None and self.predictor is not None:
                # Fused single-kernel path: generator + predictor in one pallas_call,
                # intermediate y never round-trips through HBM.
                batch = (u if u is not None else du).shape[0]
                u_in = u if u is not None else jnp.zeros((batch, self.generator.u_dim), jnp.float32)
                du_in = du if du is not None else jnp.zeros((batch, self.generator.u_dim), jnp.float32)
                y, d = _gen_and_pred_call(u_in, du_in, self.generator, self.predictor)
            else:
                y = self.generator.forward(u, du, first) if self.generator is not None else None
                d = (
                    self.predictor.forward(jax.lax.stop_gradient(y), first)
                    if self.predictor is not None
                    else None
                )
            return (y, d)
        elif mode == Model.GEN:
            y = self.generator.forward(u, du, first) if self.generator is not None else None
            return (y, d)
        elif mode == Model.PRED:
            d = self.predictor.forward(y, first) if self.predictor is not None else None
            return (y, d)

    @staticmethod
    def detect_learn_mode(y, yhat, d, dhat):
        if y is not None and yhat is not None and d is not None and dhat is not None:
            return Model.LEARN_GEN_AND_PRED
        elif y is not None and yhat is not None and dhat is None:
            return Model.LEARN_GEN
        elif yhat is None and d is not None and dhat is not None:
            return Model.LEARN_PRED
        raise ValueError("Unable to detect the forward mode")

    def learn(self, y, yhat, d, dhat):
        # TODO(synk): actual training would require custom_vjp + backward kernels;
        # the spec's learn() only does bookkeeping and returns loss=-1.0.
        mode = Model.detect_learn_mode(y, yhat, d, dhat)
        loss_as_float = -1.0
        y_clean, yhat_clean, d_clean, dhat_clean = (y, yhat, d, dhat)
        if mode == Model.LEARN_GEN:
            d_clean = None
        elif mode == Model.LEARN_PRED:
            y_clean = None
        return (loss_as_float, y_clean, yhat_clean, d_clean, dhat_clean)

    def compare(self, a, b, how="mse"):
        assert how in ["mse", "max"] or how.startswith("geq")
        if jnp.issubdtype(a.dtype, jnp.integer) and jnp.issubdtype(b.dtype, jnp.integer):
            return 1.0 - float(jnp.all(a == b))
        elif how == "mse":
            # Returns the device scalar (torch also returns a tensor here);
            # avoids forcing a host sync per compare() in hot loops.
            return _mse(a, b)
        elif how == "max":
            return 1.0 - float(jnp.argmax(a) == jnp.argmax(b))
        else:
            thres = float(how[3:])
            return 1.0 - float(jnp.sum((a > thres) == (b > thres))) / a.size

    def set_out_function(self, fcn):
        self.out = fcn

    # TODO(synk): save/load (torch state_dict serialization) have no Pallas
    # equivalent and are intentionally omitted.


# ----------------------------------------------------------------------------
# Demo
# ----------------------------------------------------------------------------
if __name__ == "__main__":
    B, U, H, Y, D = 8, 16, 32, 32, 8

    key = jax.random.PRNGKey(0)
    k_gen, k_pred, k_u, k_du = jax.random.split(key, 4)

    gen = Generator(k_gen, u_dim=U, hidden=H, y_dim=Y)
    pred = Predictor(k_pred, y_dim=Y, hidden=H, d_dim=D)
    model = Model(gen, pred, attributes=[object(), object()])

    u = jax.random.normal(k_u, (B, U), jnp.float32)
    du = jax.random.normal(k_du, (B, U), jnp.float32)

    # GEN_AND_PRED mode (single fused pallas_call)
    y, d = model.forward(u=u, du=du, y=None, d=None, first=True)
    y = jax.block_until_ready(y)
    d = jax.block_until_ready(d)
    assert y.shape == (B, Y) and d.shape == (B, D)

    # GEN mode (d passed through) — must match the fused generator output
    d_given = jnp.ones((B, D), jnp.float32)
    y2, d2 = model.forward(u=u, du=du, y=None, d=d_given)
    jax.block_until_ready(y2)
    assert d2 is d_given
    assert jnp.allclose(y, y2, atol=1e-5), "fused vs. standalone generator mismatch"

    # PRED mode (y passed through) — must match the fused predictor output
    y3, d3 = model.forward(u=None, du=None, y=y, d=None)
    jax.block_until_ready(d3)
    assert jnp.allclose(d, d3, atol=1e-4), "fused vs. standalone predictor mismatch"

    # compare (MSE) via tiled Pallas reduction kernel; cross-check vs. plain JAX
    score = model.compare(d, d_given, how="mse")
    ref = jnp.mean((d - d_given) ** 2)
    assert abs(float(score) - float(ref)) < 1e-5, (float(score), float(ref))

    # learn() bookkeeping path
    loss, yc, yhc, dc, dhc = model.learn(y, y2, None, None)
    assert loss == -1.0 and dc is None

    print("KERNEL_OK")
</pallas_src>

<mosaic_0001>
module attributes {stable_mosaic.version = 11 : i64} {
  func.func @_gen_pred_kernel(%arg0: i32, %arg1: memref<8x16xf32, #tpu.memory_space<vmem>>, %arg2: memref<8x16xf32, #tpu.memory_space<vmem>>, %arg3: memref<16x32xbf16, #tpu.memory_space<vmem>>, %arg4: memref<16x32xbf16, #tpu.memory_space<vmem>>, %arg5: memref<1x32xf32, #tpu.memory_space<vmem>>, %arg6: memref<32x128xbf16, #tpu.memory_space<vmem>>, %arg7: memref<1x128xf32, #tpu.memory_space<vmem>>, %arg8: memref<128x32xbf16, #tpu.memory_space<vmem>>, %arg9: memref<1x32xf32, #tpu.memory_space<vmem>>, %arg10: memref<32x128xbf16, #tpu.memory_space<vmem>>, %arg11: memref<1x128xf32, #tpu.memory_space<vmem>>, %arg12: memref<8x128xf32, #tpu.memory_space<vmem>>, %arg13: memref<8x128xf32, #tpu.memory_space<vmem>>) attributes {dimension_semantics = [#tpu.dimension_semantics<parallel>], iteration_bounds = array<i64: 1>, scalar_prefetch = 0 : i64, scratch_operands = 0 : i64, tpu.core_type = #tpu.core_type<tc>, window_params = [{transform_indices = @transform_0, window_bounds = array<i64: 8, 16>}, {transform_indices = @transform_1, window_bounds = array<i64: 8, 16>}, {pipeline_mode = #tpu.pipeline_mode<synchronous>, transform_indices = @transform_2, window_bounds = array<i64: 16, 32>}, {pipeline_mode = #tpu.pipeline_mode<synchronous>, transform_indices = @transform_3, window_bounds = array<i64: 16, 32>}, {pipeline_mode = #tpu.pipeline_mode<synchronous>, transform_indices = @transform_4, window_bounds = array<i64: 1, 32>}, {pipeline_mode = #tpu.pipeline_mode<synchronous>, transform_indices = @transform_5, window_bounds = array<i64: 32, 128>}, {pipeline_mode = #tpu.pipeline_mode<synchronous>, transform_indices = @transform_6, window_bounds = array<i64: 1, 128>}, {pipeline_mode = #tpu.pipeline_mode<synchronous>, transform_indices = @transform_7, window_bounds = array<i64: 128, 32>}, {pipeline_mode = #tpu.pipeline_mode<synchronous>, transform_indices = @transform_8, window_bounds = array<i64: 1, 32>}, {pipeline_mode = #tpu.pipeline_mode<synchronous>, transform_indices = @transform_9, window_bounds = array<i64: 32, 128>}, {pipeline_mode = #tpu.pipeline_mode<synchronous>, transform_indices = @transform_10, window_bounds = array<i64: 1, 128>}, {transform_indices = @transform_11, window_bounds = array<i64: 8, 128>}, {transform_indices = @transform_12, window_bounds = array<i64: 8, 128>}]} {
    %c0 = arith.constant 0 : index
    %c0_0 = arith.constant 0 : index
    %0 = vector.load %arg1[%c0, %c0_0] : memref<8x16xf32, #tpu.memory_space<vmem>>, vector<8x16xf32>
    %1 = arith.truncf %0 : vector<8x16xf32> to vector<8x16xbf16>
    %c0_1 = arith.constant 0 : index
    %c0_2 = arith.constant 0 : index
    %2 = vector.load %arg3[%c0_1, %c0_2] : memref<16x32xbf16, #tpu.memory_space<vmem>>, vector<16x32xbf16>
    %cst = arith.constant dense<0.000000e+00> : vector<8x32xf32>
    %3 = tpu.matmul %1, %2, %cst {dimension_numbers = #tpu.dot_dimension_numbers<[1], [0], [0], [1], [0, 0, 1, 1], [], []>} : vector<8x16xbf16>, vector<16x32xbf16>, vector<8x32xf32> -> vector<8x32xf32>
    %c0_3 = arith.constant 0 : index
    %c0_4 = arith.constant 0 : index
    %4 = vector.load %arg2[%c0_3, %c0_4] : memref<8x16xf32, #tpu.memory_space<vmem>>, vector<8x16xf32>
    %5 = arith.truncf %4 : vector<8x16xf32> to vector<8x16xbf16>
    %c0_5 = arith.constant 0 : index
    %c0_6 = arith.constant 0 : index
    %6 = vector.load %arg4[%c0_5, %c0_6] : memref<16x32xbf16, #tpu.memory_space<vmem>>, vector<16x32xbf16>
    %cst_7 = arith.constant dense<0.000000e+00> : vector<8x32xf32>
    %7 = tpu.matmul %5, %6, %cst_7 {dimension_numbers = #tpu.dot_dimension_numbers<[1], [0], [0], [1], [0, 0, 1, 1], [], []>} : vector<8x16xbf16>, vector<16x32xbf16>, vector<8x32xf32> -> vector<8x32xf32>
    %8 = arith.addf %3, %7 : vector<8x32xf32>
    %c0_8 = arith.constant 0 : index
    %c0_9 = arith.constant 0 : index
    %9 = vector.load %arg5[%c0_8, %c0_9] : memref<1x32xf32, #tpu.memory_space<vmem>>, vector<1x32xf32>
    %10 = vector.broadcast %9 : vector<1x32xf32> to vector<8x32xf32>
    %11 = arith.addf %8, %10 : vector<8x32xf32>
    %12 = math.tanh %11 : vector<8x32xf32>
    %13 = arith.truncf %12 : vector<8x32xf32> to vector<8x32xbf16>
    %c0_10 = arith.constant 0 : index
    %c0_11 = arith.constant 0 : index
    %14 = vector.load %arg6[%c0_10, %c0_11] : memref<32x128xbf16, #tpu.memory_space<vmem>>, vector<32x128xbf16>
    %cst_12 = arith.constant dense<0.000000e+00> : vector<8x128xf32>
    %15 = tpu.matmul %13, %14, %cst_12 {dimension_numbers = #tpu.dot_dimension_numbers<[1], [0], [0], [1], [0, 0, 1, 1], [], []>} : vector<8x32xbf16>, vector<32x128xbf16>, vector<8x128xf32> -> vector<8x128xf32>
    %c0_13 = arith.constant 0 : index
    %c0_14 = arith.constant 0 : index
    %16 = vector.load %arg7[%c0_13, %c0_14] : memref<1x128xf32, #tpu.memory_space<vmem>>, vector<1x128xf32>
    %17 = vector.broadcast %16 : vector<1x128xf32> to vector<8x128xf32>
    %18 = arith.addf %15, %17 : vector<8x128xf32>
    %c0_15 = arith.constant 0 : index
    %c0_16 = arith.constant 0 : index
    %19 = vector.load %arg12[%c0_15, %c0_16] : memref<8x128xf32, #tpu.memory_space<vmem>>, vector<8x128xf32>
    tpu.vector_store %arg12[%c0_15, %c0_16], %18 {strides = array<i32>} : memref<8x128xf32, #tpu.memory_space<vmem>>, vector<8x128xf32>,
    %20 = arith.truncf %18 : vector<8x128xf32> to vector<8x128xbf16>
    %c0_17 = arith.constant 0 : index
    %c0_18 = arith.constant 0 : index
    %21 = vector.load %arg8[%c0_17, %c0_18] : memref<128x32xbf16, #tpu.memory_space<vmem>>, vector<128x32xbf16>
    %cst_19 = arith.constant dense<0.000000e+00> : vector<8x32xf32>
    %22 = tpu.matmul %20, %21, %cst_19 {dimension_numbers = #tpu.dot_dimension_numbers<[1], [0], [0], [1], [0, 0, 1, 1], [], []>} : vector<8x128xbf16>, vector<128x32xbf16>, vector<8x32xf32> -> vector<8x32xf32>
    %c0_20 = arith.constant 0 : index
    %c0_21 = arith.constant 0 : index
    %23 = vector.load %arg9[%c0_20, %c0_21] : memref<1x32xf32, #tpu.memory_space<vmem>>, vector<1x32xf32>
    %24 = vector.broadcast %23 : vector<1x32xf32> to vector<8x32xf32>
    %25 = arith.addf %22, %24 : vector<8x32xf32>
    %26 = math.tanh %25 : vector<8x32xf32>
    %27 = arith.truncf %26 : vector<8x32xf32> to vector<8x32xbf16>
    %c0_22 = arith.constant 0 : index
    %c0_23 = arith.constant 0 : index
    %28 = vector.load %arg10[%c0_22, %c0_23] : memref<32x128xbf16, #tpu.memory_space<vmem>>, vector<32x128xbf16>
    %cst_24 = arith.constant dense<0.000000e+00> : vector<8x128xf32>
    %29 = tpu.matmul %27, %28, %cst_24 {dimension_numbers = #tpu.dot_dimension_numbers<[1], [0], [0], [1], [0, 0, 1, 1], [], []>} : vector<8x32xbf16>, vector<32x128xbf16>, vector<8x128xf32> -> vector<8x128xf32>
    %c0_25 = arith.constant 0 : index
    %c0_26 = arith.constant 0 : index
    %30 = vector.load %arg11[%c0_25, %c0_26] : memref<1x128xf32, #tpu.memory_space<vmem>>, vector<1x128xf32>
    %31 = vector.broadcast %30 : vector<1x128xf32> to vector<8x128xf32>
    %32 = arith.addf %29, %31 : vector<8x128xf32>
    %c0_27 = arith.constant 0 : index
    %c0_28 = arith.constant 0 : index
    %33 = vector.load %arg13[%c0_27, %c0_28] : memref<8x128xf32, #tpu.memory_space<vmem>>, vector<8x128xf32>
    tpu.vector_store %arg13[%c0_27, %c0_28], %32 {strides = array<i32>} : memref<8x128xf32, #tpu.memory_space<vmem>>, vector<8x128xf32>,
    return
  }
  func.func @transform_0(%arg0: i32) -> (i32, i32) {
    %c0_i32 = arith.constant 0 : i32
    %c0_i32_0 = arith.constant 0 : i32
    return %arg0, %c0_i32 : i32, i32
  }
  func.func @transform_1(%arg0: i32) -> (i32, i32) {
    %c0_i32 = arith.constant 0 : i32
    %c0_i32_0 = arith.constant 0 : i32
    return %arg0, %c0_i32 : i32, i32
  }
  func.func @transform_2(%arg0: i32) -> (i32, i32) {
    %c0_i32 = arith.constant 0 : i32
    %c0_i32_0 = arith.constant 0 : i32
    %c0_i32_1 = arith.constant 0 : i32
    return %c0_i32, %c0_i32_0 : i32, i32
  }
  func.func @transform_3(%arg0: i32) -> (i32, i32) {
    %c0_i32 = arith.constant 0 : i32
    %c0_i32_0 = arith.constant 0 : i32
    %c0_i32_1 = arith.constant 0 : i32
    return %c0_i32, %c0_i32_0 : i32, i32
  }
  func.func @transform_4(%arg0: i32) -> (i32, i32) {
    %c0_i32 = arith.constant 0 : i32
    %c0_i32_0 = arith.constant 0 : i32
    %c0_i32_1 = arith.constant 0 : i32
    return %c0_i32, %c0_i32_0 : i32, i32
  }
  func.func @transform_5(%arg0: i32) -> (i32, i32) {
    %c0_i32 = arith.constant 0 : i32
    %c0_i32_0 = arith.constant 0 : i32
    %c0_i32_1 = arith.constant 0 : i32
    return %c0_i32, %c0_i32_0 : i32, i32
  }
  func.func @transform_6(%arg0: i32) -> (i32, i32) {
    %c0_i32 = arith.constant 0 : i32
    %c0_i32_0 = arith.constant 0 : i32
    %c0_i32_1 = arith.constant 0 : i32
    return %c0_i32, %c0_i32_0 : i32, i32
  }
  func.func @transform_7(%arg0: i32) -> (i32, i32) {
    %c0_i32 = arith.constant 0 : i32
    %c0_i32_0 = arith.constant 0 : i32
    %c0_i32_1 = arith.constant 0 : i32
    return %c0_i32, %c0_i32_0 : i32, i32
  }
  func.func @transform_8(%arg0: i32) -> (i32, i32) {
    %c0_i32 = arith.constant 0 : i32
    %c0_i32_0 = arith.constant 0 : i32
    %c0_i32_1 = arith.constant 0 : i32
    return %c0_i32, %c0_i32_0 : i32, i32
  }
  func.func @transform_9(%arg0: i32) -> (i32, i32) {
    %c0_i32 = arith.constant 0 : i32
    %c0_i32_0 = arith.constant 0 : i32
    %c0_i32_1 = arith.constant 0 : i32
    return %c0_i32, %c0_i32_0 : i32, i32
  }
  func.func @transform_10(%arg0: i32) -> (i32, i32) {
    %c0_i32 = arith.constant 0 : i32
    %c0_i32_0 = arith.constant 0 : i32
    %c0_i32_1 = arith.constant 0 : i32
    return %c0_i32, %c0_i32_0 : i32, i32
  }
  func.func @transform_11(%arg0: i32) -> (i32, i32) {
    %c0_i32 = arith.constant 0 : i32
    %c0_i32_0 = arith.constant 0 : i32
    return %arg0, %c0_i32 : i32, i32
  }
  func.func @transform_12(%arg0: i32) -> (i32, i32) {
    %c0_i32 = arith.constant 0 : i32
    %c0_i32_0 = arith.constant 0 : i32
    return %arg0, %c0_i32 : i32, i32
  }
}

</mosaic_0001>

<llo_original>
// kernel: tpu_custom_call.1
$region0: #{tpu_custom_call.1}
  #allocation0 [shape = 'u32[]', space=smem, size = 0x4, offset = 0x4, fixed_abs, tag = 'smem constant byte address 0x4 - core index']
  #allocation1 [shape = 'u32[144,128]{1,0:T(1,128)}', space=vmem, size = 0x12000, scoped, tag = 'internal scratch']
  %s0 = inlined_call_operand.vmem [shape: f32[8,16], index: 0, kind: input, shape index: {}]
  %s1 = inlined_call_operand.vmem [shape: f32[8,16], index: 1, kind: input, shape index: {}]
  %s2 = inlined_call_operand.vmem [shape: bf16[16,32], index: 2, kind: input, shape index: {}]
  %s3 = inlined_call_operand.vmem [shape: bf16[16,32], index: 3, kind: input, shape index: {}]
  %s4 = inlined_call_operand.vmem [shape: f32[1,32], index: 4, kind: input, shape index: {}]
  %s5 = inlined_call_operand.vmem [shape: bf16[32,128], index: 5, kind: input, shape index: {}]
  %s6 = inlined_call_operand.vmem [shape: f32[1,128], index: 6, kind: input, shape index: {}]
  %s7 = inlined_call_operand.vmem [shape: bf16[128,32], index: 7, kind: input, shape index: {}]
  %s8 = inlined_call_operand.vmem [shape: f32[1,32], index: 8, kind: input, shape index: {}]
  %s9 = inlined_call_operand.vmem [shape: bf16[32,128], index: 9, kind: input, shape index: {}]
  %s10 = inlined_call_operand.vmem [shape: f32[1,128], index: 10, kind: input, shape index: {}]
  %s11 = inlined_call_operand.hbm [shape: f32[8,128], index: 11, kind: output, shape index: {0}]
  %s12 = inlined_call_operand.hbm [shape: f32[8,128], index: 12, kind: output, shape index: {1}]
  %13 = xla_tuple %s11, %s12
  %s14 = sld [smem:[#allocation0]]
  $region62: #{tpu_custom_call.1} parent=0
    _
  %s16 = ssub.s32 1, %s14
  %s17 = scalar_select 0, %s16, %s14
  $region1: #{tpu_custom_call.1} parent=0
    #allocation2 [shape = 'u8[4096]{0}', space=vmem, size = 0x1000, scoped, tag = 'output window, operand 0, single buffered']
    #allocation3 [shape = 's32[1]{0}', space=sflag, size = 0x4, scoped, tag = 'scoped memory for tpu_custom_call.1']
    #allocation4 [shape = 'u8[4096]{0}', space=vmem, size = 0x1000, scoped, tag = 'output window, operand 1, single buffered']
    #allocation5 [shape = 's32[1]{0}', space=sflag, size = 0x4, scoped, tag = 'scoped memory for tpu_custom_call.1']
    %18 = vsyncpa [#allocation3], 0
    %19 = vsyncpa [#allocation5], 0
    // Predicated region
    $region2: #{tpu_custom_call.1} parent=1 // pred_check
      _
    $region3: #{tpu_custom_call.1} parent=1 // pred_check_branch
      %21 = sbr.rel (0) target = $region5
    $region4: #{tpu_custom_call.1} parent=1 // pred_region
      _
    $region5: #{tpu_custom_call.1} parent=1 // pred_fallthru
      _
    // Predicated region
    $region6: #{tpu_custom_call.1} parent=1 // pred_check
      _
    $region7: #{tpu_custom_call.1} parent=1 // pred_check_branch
      %23 = sbr.rel (0) target = $region9
    $region8: #{tpu_custom_call.1} parent=1 // pred_region
      _
    $region9: #{tpu_custom_call.1} parent=1 // pred_fallthru
      _
    // Predicated region
    $region10: #{tpu_custom_call.1} parent=1 // pred_check
      _
    $region11: #{tpu_custom_call.1} parent=1 // pred_check_branch
      %25 = sbr.rel (0) target = $region13
    $region12: #{tpu_custom_call.1} parent=1 // pred_region
      _
    $region13: #{tpu_custom_call.1} parent=1 // pred_fallthru
      _
    // Predicated region
    $region14: #{tpu_custom_call.1} parent=1 // pred_check
      _
    $region15: #{tpu_custom_call.1} parent=1 // pred_check_branch
      %27 = sbr.rel (0) target = $region17
    $region16: #{tpu_custom_call.1} parent=1 // pred_region
      _
    $region17: #{tpu_custom_call.1} parent=1 // pred_fallthru
      _
    // Predicated region
    $region18: #{tpu_custom_call.1} parent=1 // pred_check
      _
    $region19: #{tpu_custom_call.1} parent=1 // pred_check_branch
      %29 = sbr.rel (0) target = $region21
    $region20: #{tpu_custom_call.1} parent=1 // pred_region
      _
    $region21: #{tpu_custom_call.1} parent=1 // pred_fallthru
      _
    // Predicated region
    $region22: #{tpu_custom_call.1} parent=1 // pred_check
      _
    $region23: #{tpu_custom_call.1} parent=1 // pred_check_branch
      %31 = sbr.rel (0) target = $region25
    $region24: #{tpu_custom_call.1} parent=1 // pred_region
      _
    $region25: #{tpu_custom_call.1} parent=1 // pred_fallthru
      _
    // Predicated region
    $region26: #{tpu_custom_call.1} parent=1 // pred_check
      _
    $region27: #{tpu_custom_call.1} parent=1 // pred_check_branch
      %33 = sbr.rel (0) target = $region29
    $region28: #{tpu_custom_call.1} parent=1 // pred_region
      _
    $region29: #{tpu_custom_call.1} parent=1 // pred_fallthru
      _
    // Predicated region
    $region30: #{tpu_custom_call.1} parent=1 // pred_check
      _
    $region31: #{tpu_custom_call.1} parent=1 // pred_check_branch
      %35 = sbr.rel (0) target = $region33
    $region32: #{tpu_custom_call.1} parent=1 // pred_region
      _
    $region33: #{tpu_custom_call.1} parent=1 // pred_fallthru
      _
    // Predicated region
    $region34: #{tpu_custom_call.1} parent=1 // pred_check
      _
    $region35: #{tpu_custom_call.1} parent=1 // pred_check_branch
      %37 = sbr.rel (0) target = $region37
    $region36: #{tpu_custom_call.1} parent=1 // pred_region
      _
    $region37: #{tpu_custom_call.1} parent=1 // pred_fallthru
      _
    // Predicated region
    $region38: #{tpu_custom_call.1} parent=1 // pred_check
      _
    $region39: #{tpu_custom_call.1} parent=1 // pred_check_branch
      %39 = sbr.rel (0) target = $region41
    $region40: #{tpu_custom_call.1} parent=1 // pred_region
      _
    $region41: #{tpu_custom_call.1} parent=1 // pred_fallthru
      _
    // Predicated region
    $region42: #{tpu_custom_call.1} parent=1 // pred_check
      _
    $region43: #{tpu_custom_call.1} parent=1 // pred_check_branch
      %41 = sbr.rel (0) target = $region45
    $region44: #{tpu_custom_call.1} parent=1 // pred_region
      _
    $region45: #{tpu_custom_call.1} parent=1 // pred_fallthru
      _
    %v43 = vld [vmem:[%s0] sm:$0xff]
    %v44 = vpack.c.bf16 %v43, %v43
    %v45 = vld [vmem:[%s2] sm:$0xf]
    %v46 = vld [vmem:[%s2 + $0x4] sm:$0xf]
    %v47 = vld [vmem:[%s1] sm:$0xff]
    %v48 = vpack.c.bf16 %v47, %v47
    %v49 = vld [vmem:[%s3] sm:$0xf]
    %v50 = vld [vmem:[%s3 + $0x4] sm:$0xf]
    %v53 = vunpack.c.l.b16 %v49
    %v54 = vunpack.c.l.b16 %v50
    %v55 = vpack.c.b16 %v54, %v53
    %vm57 = vcmask 130048
    %v59 = vsel %vm57, %v48, 0
    %61 = vmatprep.subr.bf16.mxu0 0
    %62 = vmatpush1.bf16.msra.mxu0 %v55
    %63 = vmatprep.subr.bf16.mxu0 0
    %64 = vmatpush1.bf16.msra.mxu0 0
    %65 = vmatprep.subr.bf16.mxu0 0
    %66 = vmatpush1.bf16.msra.mxu0 0
    %67 = vmatprep.subr.bf16.mxu0 0
    %68 = vmatpush1.bf16.msra.mxu0 0
    %69 = vmatprep.subr.bf16.mxu0 0
    %70 = vmatpush1.bf16.msra.mxu0 0
    %71 = vmatprep.subr.bf16.mxu0 0
    %72 = vmatpush1.bf16.msra.mxu0 0
    %73 = vmatprep.subr.bf16.mxu0 0
    %74 = vmatpush1.bf16.msra.mxu0 0
    %75 = vmatprep.subr.bf16.mxu0 0
    %76 = vmatpush1.bf16.msra.mxu0 0
    %77 = vmatprep.subr.bf16.mxu0 0
    %78 = vmatpush1.bf16.msra.mxu0 0
    %79 = vmatprep.subr.bf16.mxu0 0
    %80 = vmatpush1.bf16.msra.mxu0 0
    %81 = vmatprep.subr.bf16.mxu0 0
    %82 = vmatpush1.bf16.msra.mxu0 0
    %83 = vmatprep.subr.bf16.mxu0 0
    %84 = vmatpush1.bf16.msra.mxu0 0
    %85 = vmatprep.subr.bf16.mxu0 0
    %86 = vmatpush1.bf16.msra.mxu0 0
    %87 = vmatprep.subr.bf16.mxu0 0
    %88 = vmatpush1.bf16.msra.mxu0 0
    %89 = vmatprep.subr.bf16.mxu0 0
    %90 = vmatpush1.bf16.msra.mxu0 0
    %91 = vmatprep.subr.bf16.mxu0 0
    %92 = vmatpush1.bf16.msra.mxu0 0
    %93 = vmatprep.mubr.bf16.mxu0 0
    %94 = vmatmul.mubr.bf16.gmra.mrb[0].mxu0 %v59
    %v95 = vpop.f32.mrb[0].mxu0
    %v96 = vadd.f32 0.0, %v95
    %v97 = vpop.f32.mrb[0].mxu0
    %v98 = vpop.f32.mrb[0].mxu0
    %v99 = vpop.f32.mrb[0].mxu0
    %100 = vdwg.mxu0
    %v103 = vunpack.c.l.b16 %v45
    %v104 = vunpack.c.l.b16 %v46
    %v105 = vpack.c.b16 %v104, %v103
    %v108 = vsel %vm57, %v44, 0
    %110 = vmatprep.subr.bf16.mxu0 0
    %111 = vmatpush1.bf16.msra.mxu0 %v105
    %112 = vmatprep.subr.bf16.mxu0 0
    %113 = vmatpush1.bf16.msra.mxu0 0
    %114 = vmatprep.subr.bf16.mxu0 0
    %115 = vmatpush1.bf16.msra.mxu0 0
    %116 = vmatprep.subr.bf16.mxu0 0
    %117 = vmatpush1.bf16.msra.mxu0 0
    %118 = vmatprep.subr.bf16.mxu0 0
    %119 = vmatpush1.bf16.msra.mxu0 0
    %120 = vmatprep.subr.bf16.mxu0 0
    %121 = vmatpush1.bf16.msra.mxu0 0
    %122 = vmatprep.subr.bf16.mxu0 0
    %123 = vmatpush1.bf16.msra.mxu0 0
    %124 = vmatprep.subr.bf16.mxu0 0
    %125 = vmatpush1.bf16.msra.mxu0 0
    %126 = vmatprep.subr.bf16.mxu0 0
    %127 = vmatpush1.bf16.msra.mxu0 0
    %128 = vmatprep.subr.bf16.mxu0 0
    %129 = vmatpush1.bf16.msra.mxu0 0
    %130 = vmatprep.subr.bf16.mxu0 0
    %131 = vmatpush1.bf16.msra.mxu0 0
    %132 = vmatprep.subr.bf16.mxu0 0
    %133 = vmatpush1.bf16.msra.mxu0 0
    %134 = vmatprep.subr.bf16.mxu0 0
    %135 = vmatpush1.bf16.msra.mxu0 0
    %136 = vmatprep.subr.bf16.mxu0 0
    %137 = vmatpush1.bf16.msra.mxu0 0
    %138 = vmatprep.subr.bf16.mxu0 0
    %139 = vmatpush1.bf16.msra.mxu0 0
    %140 = vmatprep.subr.bf16.mxu0 0
    %141 = vmatpush1.bf16.msra.mxu0 0
    %142 = vmatprep.mubr.bf16.mxu0 0
    %143 = vmatmul.mubr.bf16.gmra.mrb[0].mxu0 %v108
    %v144 = vpop.f32.mrb[0].mxu0
    %v145 = vadd.f32 %v96, %v144
    %v146 = vpop.f32.mrb[0].mxu0
    %v147 = vpop.f32.mrb[0].mxu0
    %v148 = vpop.f32.mrb[0].mxu0
    %149 = vdwg.mxu0
    %v150 = vld [vmem:[%s4] sm:$0x1]
    %v152 = vlaneseq
    %v153 = vshrl.u32 %v152, 7
    %v154 = vsub.s32 0, %v153
    %v155 = vrot.slane %v150, %v154
    %v157 = vadd.f32 %v145, %v155
    %v158 = vtanh.pop %v157
    %v159 = vpack.c.bf16 %v158, %v158
    %v160 = vld [vmem:[%s5] sm:$0xf]
    %v161 = vld [vmem:[%s5 + $0x4] sm:$0xf]
    %v162 = vld [vmem:[%s5 + $0x8] sm:$0xf]
    %v163 = vld [vmem:[%s5 + $0xc] sm:$0xf]
    %v164 = vld [vmem:[%s6] sm:$0x1]
    %v166 = vlaneseq
    %v167 = vshrl.u32 %v166, 7
    %v168 = vsub.s32 0, %v167
    %v169 = vrot.slane %v164, %v168
    %v175 = vunpack.c.l.b16 %v160
    %v176 = vunpack.c.l.b16 %v161
    %v177 = vunpack.c.l.b16 %v162
    %v178 = vunpack.c.l.b16 %v163
    %v179 = vpack.c.b16 %v176, %v175
    %v180 = vpack.c.b16 %v178, %v177
    %vm183 = vcmask 261120
    %v185 = vsel %vm183, %v159, 0
    %187 = vmatprep.subr.bf16.mxu0 0
    %188 = vmatpush1.bf16.msra.mxu0 %v179
    %189 = vmatprep.subr.bf16.mxu0 0
    %190 = vmatpush1.bf16.msra.mxu0 %v180
    %191 = vmatprep.subr.bf16.mxu0 0
    %192 = vmatpush1.bf16.msra.mxu0 0
    %193 = vmatprep.subr.bf16.mxu0 0
    %194 = vmatpush1.bf16.msra.mxu0 0
    %195 = vmatprep.subr.bf16.mxu0 0
    %196 = vmatpush1.bf16.msra.mxu0 0
    %197 = vmatprep.subr.bf16.mxu0 0
    %198 = vmatpush1.bf16.msra.mxu0 0
    %199 = vmatprep.subr.bf16.mxu0 0
    %200 = vmatpush1.bf16.msra.mxu0 0
    %201 = vmatprep.subr.bf16.mxu0 0
    %202 = vmatpush1.bf16.msra.mxu0 0
    %203 = vmatprep.subr.bf16.mxu0 0
    %204 = vmatpush1.bf16.msra.mxu0 0
    %205 = vmatprep.subr.bf16.mxu0 0
    %206 = vmatpush1.bf16.msra.mxu0 0
    %207 = vmatprep.subr.bf16.mxu0 0
    %208 = vmatpush1.bf16.msra.mxu0 0
    %209 = vmatprep.subr.bf16.mxu0 0
    %210 = vmatpush1.bf16.msra.mxu0 0
    %211 = vmatprep.subr.bf16.mxu0 0
    %212 = vmatpush1.bf16.msra.mxu0 0
    %213 = vmatprep.subr.bf16.mxu0 0
    %214 = vmatpush1.bf16.msra.mxu0 0
    %215 = vmatprep.subr.bf16.mxu0 0
    %216 = vmatpush1.bf16.msra.mxu0 0
    %217 = vmatprep.subr.bf16.mxu0 0
    %218 = vmatpush1.bf16.msra.mxu0 0
    %219 = vmatprep.mubr.bf16.mxu0 0
    %220 = vmatmul.mubr.bf16.gmra.mrb[0].mxu0 %v185
    %v221 = vpop.f32.mrb[0].mxu0
    %v222 = vadd.f32 %v169, %v221
    %v223 = vpop.f32.mrb[0].mxu0
    %v224 = vpop.f32.mrb[0].mxu0
    %v225 = vpop.f32.mrb[0].mxu0
    %226 = vdwg.mxu0
    %227 = vst [vmem:[#allocation2] sm:$0xff] %v222
    %v228 = vpack.c.bf16 %v222, %v222
    %v229 = vld [vmem:[%s7] sm:$0xf]
    %v230 = vld [vmem:[%s7 + $0x4] sm:$0xf]
    %v231 = vld [vmem:[%s7 + $0x8] sm:$0xf]
    %v232 = vld [vmem:[%s7 + $0xc] sm:$0xf]
    %v233 = vld [vmem:[%s7 + $0x10] sm:$0xf]
    %v234 = vld [vmem:[%s7 + $0x14] sm:$0xf]
    %v235 = vld [vmem:[%s7 + $0x18] sm:$0xf]
    %v236 = vld [vmem:[%s7 + $0x1c] sm:$0xf]
    %v237 = vld [vmem:[%s7 + $0x20] sm:$0xf]
    %v238 = vld [vmem:[%s7 + $0x24] sm:$0xf]
    %v239 = vld [vmem:[%s7 + $0x28] sm:$0xf]
    %v240 = vld [vmem:[%s7 + $0x2c] sm:$0xf]
    %v241 = vld [vmem:[%s7 + $0x30] sm:$0xf]
    %v242 = vld [vmem:[%s7 + $0x34] sm:$0xf]
    %v243 = vld [vmem:[%s7 + $0x38] sm:$0xf]
    %v244 = vld [vmem:[%s7 + $0x3c] sm:$0xf]
    %v245 = vld [vmem:[%s8] sm:$0x1]
    %v247 = vlaneseq
    %v248 = vshrl.u32 %v247, 7
    %v249 = vsub.s32 0, %v248
    %v250 = vrot.slane %v245, %v249
    %v268 = vunpack.c.l.b16 %v229
    %v269 = vunpack.c.l.b16 %v230
    %v270 = vunpack.c.l.b16 %v231
    %v271 = vunpack.c.l.b16 %v232
    %v272 = vunpack.c.l.b16 %v233
    %v273 = vunpack.c.l.b16 %v234
    %v274 = vunpack.c.l.b16 %v235
    %v275 = vunpack.c.l.b16 %v236
    %v276 = vunpack.c.l.b16 %v237
    %v277 = vunpack.c.l.b16 %v238
    %v278 = vunpack.c.l.b16 %v239
    %v279 = vunpack.c.l.b16 %v240
    %v280 = vunpack.c.l.b16 %v241
    %v281 = vunpack.c.l.b16 %v242
    %v282 = vunpack.c.l.b16 %v243
    %v283 = vunpack.c.l.b16 %v244
    %v284 = vpack.c.b16 %v269, %v268
    %v285 = vpack.c.b16 %v271, %v270
    %v286 = vpack.c.b16 %v273, %v272
    %v287 = vpack.c.b16 %v275, %v274
    %v288 = vpack.c.b16 %v277, %v276
    %v289 = vpack.c.b16 %v279, %v278
    %v290 = vpack.c.b16 %v281, %v280
    %v291 = vpack.c.b16 %v283, %v282
    %300 = vmatprep.subr.bf16.mxu0 0
    %301 = vmatpush1.bf16.msra.mxu0 %v284
    %302 = vmatprep.subr.bf16.mxu0 0
    %303 = vmatpush1.bf16.msra.mxu0 %v285
    %304 = vmatprep.subr.bf16.mxu0 0
    %305 = vmatpush1.bf16.msra.mxu0 %v286
    %306 = vmatprep.subr.bf16.mxu0 0
    %307 = vmatpush1.bf16.msra.mxu0 %v287
    %308 = vmatprep.subr.bf16.mxu0 0
    %309 = vmatpush1.bf16.msra.mxu0 %v288
    %310 = vmatprep.subr.bf16.mxu0 0
    %311 = vmatpush1.bf16.msra.mxu0 %v289
    %312 = vmatprep.subr.bf16.mxu0 0
    %313 = vmatpush1.bf16.msra.mxu0 %v290
    %314 = vmatprep.subr.bf16.mxu0 0
    %315 = vmatpush1.bf16.msra.mxu0 %v291
    %316 = vmatprep.subr.bf16.mxu0 0
    %317 = vmatpush1.bf16.msra.mxu0 0
    %318 = vmatprep.subr.bf16.mxu0 0
    %319 = vmatpush1.bf16.msra.mxu0 0
    %320 = vmatprep.subr.bf16.mxu0 0
    %321 = vmatpush1.bf16.msra.mxu0 0
    %322 = vmatprep.subr.bf16.mxu0 0
    %323 = vmatpush1.bf16.msra.mxu0 0
    %324 = vmatprep.subr.bf16.mxu0 0
    %325 = vmatpush1.bf16.msra.mxu0 0
    %326 = vmatprep.subr.bf16.mxu0 0
    %327 = vmatpush1.bf16.msra.mxu0 0
    %328 = vmatprep.subr.bf16.mxu0 0
    %329 = vmatpush1.bf16.msra.mxu0 0
    %330 = vmatprep.subr.bf16.mxu0 0
    %331 = vmatpush1.bf16.msra.mxu0 0
    %332 = vmatprep.mubr.bf16.mxu0 0
    %333 = vmatmul.mubr.bf16.gmra.mrb[0].mxu0 %v228
    %v334 = vpop.f32.mrb[0].mxu0
    %v335 = vadd.f32 %v250, %v334
    %v336 = vpop.f32.mrb[0].mxu0
    %v337 = vpop.f32.mrb[0].mxu0
    %v338 = vpop.f32.mrb[0].mxu0
    %339 = vdwg.mxu0
    %v340 = vtanh.pop %v335
    %v341 = vpack.c.bf16 %v340, %v340
    %v342 = vld [vmem:[%s9] sm:$0xf]
    %v343 = vld [vmem:[%s9 + $0x4] sm:$0xf]
    %v344 = vld [vmem:[%s9 + $0x8] sm:$0xf]
    %v345 = vld [vmem:[%s9 + $0xc] sm:$0xf]
    %v346 = vld [vmem:[%s10] sm:$0x1]
    %v348 = vlaneseq
    %v349 = vshrl.u32 %v348, 7
    %v350 = vsub.s32 0, %v349
    %v351 = vrot.slane %v346, %v350
    %v357 = vunpack.c.l.b16 %v342
    %v358 = vunpack.c.l.b16 %v343
    %v359 = vunpack.c.l.b16 %v344
    %v360 = vunpack.c.l.b16 %v345
    %v361 = vpack.c.b16 %v358, %v357
    %v362 = vpack.c.b16 %v360, %v359
    %v366 = vsel %vm183, %v341, 0
    %368 = vmatprep.subr.bf16.mxu0 0
    %369 = vmatpush1.bf16.msra.mxu0 %v361
    %370 = vmatprep.subr.bf16.mxu0 0
    %371 = vmatpush1.bf16.msra.mxu0 %v362
    %372 = vmatprep.subr.bf16.mxu0 0
    %373 = vmatpush1.bf16.msra.mxu0 0
    %374 = vmatprep.subr.bf16.mxu0 0
    %375 = vmatpush1.bf16.msra.mxu0 0
    %376 = vmatprep.subr.bf16.mxu0 0
    %377 = vmatpush1.bf16.msra.mxu0 0
    %378 = vmatprep.subr.bf16.mxu0 0
    %379 = vmatpush1.bf16.msra.mxu0 0
    %380 = vmatprep.subr.bf16.mxu0 0
    %381 = vmatpush1.bf16.msra.mxu0 0
    %382 = vmatprep.subr.bf16.mxu0 0
    %383 = vmatpush1.bf16.msra.mxu0 0
    %384 = vmatprep.subr.bf16.mxu0 0
    %385 = vmatpush1.bf16.msra.mxu0 0
    %386 = vmatprep.subr.bf16.mxu0 0
    %387 = vmatpush1.bf16.msra.mxu0 0
    %388 = vmatprep.subr.bf16.mxu0 0
    %389 = vmatpush1.bf16.msra.mxu0 0
    %390 = vmatprep.subr.bf16.mxu0 0
    %391 = vmatpush1.bf16.msra.mxu0 0
    %392 = vmatprep.subr.bf16.mxu0 0
    %393 = vmatpush1.bf16.msra.mxu0 0
    %394 = vmatprep.subr.bf16.mxu0 0
    %395 = vmatpush1.bf16.msra.mxu0 0
    %396 = vmatprep.subr.bf16.mxu0 0
    %397 = vmatpush1.bf16.msra.mxu0 0
    %398 = vmatprep.subr.bf16.mxu0 0
    %399 = vmatpush1.bf16.msra.mxu0 0
    %400 = vmatprep.mubr.bf16.mxu0 0
    %401 = vmatmul.mubr.bf16.gmra.mrb[0].mxu0 %v366
    %v402 = vpop.f32.mrb[0].mxu0
    %v403 = vadd.f32 %v351, %v402
    %v404 = vpop.f32.mrb[0].mxu0
    %v405 = vpop.f32.mrb[0].mxu0
    %v406 = vpop.f32.mrb[0].mxu0
    %407 = vdwg.mxu0
    %408 = vst [vmem:[#allocation4] sm:$0xff] %v403
    // Predicated region
    $region46: #{tpu_custom_call.1} parent=1 // pred_check
      _
    $region47: #{tpu_custom_call.1} parent=1 // pred_check_branch
      %410 = sbr.rel (0) target = $region49
    $region48: #{tpu_custom_call.1} parent=1 // pred_region
      %s412 = ssub.s32 128, 128
      %413 = vsyncadd [#allocation3], %s412
      %s415 = sshll.u32 [#allocation2], 4
      %s416 = int_to_ptr.vmem [resolvable:$true] %s415
      %418 = dma.vmem_to_hbm [thread:$0]  %s416, 128, %s11, [#allocation3]
    $region49: #{tpu_custom_call.1} parent=1 // pred_fallthru
      _
    // Predicated region
    $region50: #{tpu_custom_call.1} parent=1 // pred_check
      _
    $region51: #{tpu_custom_call.1} parent=1 // pred_check_branch
      %420 = sbr.rel (0) target = $region53
    $region52: #{tpu_custom_call.1} parent=1 // pred_region
      %s422 = ssub.s32 128, 128
      %423 = vsyncadd [#allocation5], %s422
      %s425 = sshll.u32 [#allocation4], 4
      %s426 = int_to_ptr.vmem [resolvable:$true] %s425
      %428 = dma.vmem_to_hbm [thread:$0]  %s426, 128, %s12, [#allocation5]
    $region53: #{tpu_custom_call.1} parent=1 // pred_fallthru
      _
    // Predicated region
    $region54: #{tpu_custom_call.1} parent=1 // pred_check
      _
    $region55: #{tpu_custom_call.1} parent=1 // pred_check_branch
      %430 = sbr.rel (0) target = $region57
    $region56: #{tpu_custom_call.1} parent=1 // pred_region
      %431 = dma.done [#allocation3], 128
    $region57: #{tpu_custom_call.1} parent=1 // pred_fallthru
      _
    // Predicated region
    $region58: #{tpu_custom_call.1} parent=1 // pred_check
      _
    $region59: #{tpu_custom_call.1} parent=1 // pred_check_branch
      %433 = sbr.rel (0) target = $region61
    $region60: #{tpu_custom_call.1} parent=1 // pred_region
      %434 = dma.done [#allocation5], 128
    $region61: #{tpu_custom_call.1} parent=1 // pred_fallthru
      _
    %435 = vsyncpa [#allocation3], 1
    %436 = vsyncpa [#allocation5], 1

</llo_original>
